<compile_context>
chip_gen: v7x
topology: tpu7x:2x2x1
jax: 0.10.0
libtpu: 0.0.40
codegen_flags: <defaults>
</compile_context>

<pallas_src>
import jax
import jax.numpy as jnp
from jax.experimental import pallas as pl
from jax.experimental.pallas import tpu as pltpu

_LEAKY_SLOPE = 0.01  # F.leaky_relu default negative_slope


def _autoencoder_kernel(x_ref, w1t_ref, b1_ref, w2t_ref, b2_ref, o_ref):
    # x_ref: (tn, C)   w1t_ref: (C, L)   b1_ref: (1, L)
    # w2t_ref: (L, C)  b2_ref: (1, C)    o_ref: (tn, C)
    # Encoder: h = x @ W1^T + b1   (W1^T pre-materialized -> canonical (M,K)x(K,N))
    h = jnp.dot(x_ref[...], w1t_ref[...], preferred_element_type=jnp.float32)
    h = h + b1_ref[...]                                    # f32 bias add
    z = jnp.where(h > 0, h, _LEAKY_SLOPE * h)              # f32 leaky_relu, VMEM-only
    # Decoder: out = z @ W2^T + b2   (latent never touches HBM)
    out = jnp.dot(z.astype(w2t_ref.dtype), w2t_ref[...],
                  preferred_element_type=jnp.float32)
    out = out + b2_ref[...]                                 # f32 bias add
    o_ref[...] = out.astype(o_ref.dtype)


def simple_autoencoder_forward(x, w1, b1, w2, b2, *, tile_n=2048, use_bf16=False):
    """recon = Linear2(leaky_relu(Linear1(x)))  — matches SimpleAutoencoder.forward.

    x:  (N, C) float32
    w1: (L, C), b1: (L,)   -- encoder nn.Linear(C, L)   (PyTorch layout)
    w2: (C, L), b2: (C,)   -- decoder nn.Linear(L, C)
    use_bf16: stream x / w1 / w2 as bf16 (f32 accumulation & f32 elementwise/output).
    returns (N, C) float32
    """
    N, C = x.shape
    L = w1.shape[0]
    assert w1.shape == (L, C) and w2.shape == (C, L)
    assert b1.shape == (L,) and b2.shape == (C,)

    # ---- one-time (tiny) weight transposes: canonical MXU layout inside the kernel
    w1t = w1.T  # (C, L)
    w2t = w2.T  # (L, C)

    stream_dtype = jnp.bfloat16 if use_bf16 else x.dtype
    x_in = x.astype(stream_dtype)
    w1t = w1t.astype(stream_dtype)
    w2t = w2t.astype(stream_dtype)
    b1_2d = b1.reshape(1, L).astype(jnp.float32)   # biases stay f32 (added post-acc)
    b2_2d = b2.reshape(1, C).astype(jnp.float32)

    # ---- N tiling: multiple-of-8 tile, no padding; cap the tile so the grid has
    #      >= ~4 steps when N allows (v7x megacore sharding + DMA/compute overlap).
    tile_n = max(8, (tile_n // 8) * 8)
    if N <= 8:
        tn = N                                   # single (full-extent) block
    else:
        tn = min(tile_n, max(8, (N // 4 // 8) * 8))
    grid = (pl.cdiv(N, tn),)                     # boundary block masked by Pallas

    elem = 2 if use_bf16 else 4
    cost = pl.CostEstimate(
        flops=4 * N * C * L,                                 # two matmuls: 2*N*C*L each
        transcendentals=0,
        bytes_accessed=(N * C * elem            # x read
                        + N * C * 4             # out write (f32)
                        + 2 * C * L * elem      # weights
                        + (L + C) * 4),         # biases
    )

    out = pl.pallas_call(
        _autoencoder_kernel,
        out_shape=jax.ShapeDtypeStruct((N, C), jnp.float32),
        grid=grid,
        in_specs=[
            pl.BlockSpec((tn, C), lambda i: (i, 0)),   # x: tiled over N (pipelined)
            pl.BlockSpec((C, L), lambda i: (0, 0)),    # W1^T: VMEM-resident
            pl.BlockSpec((1, L), lambda i: (0, 0)),    # b1:   resident
            pl.BlockSpec((L, C), lambda i: (0, 0)),    # W2^T: resident
            pl.BlockSpec((1, C), lambda i: (0, 0)),    # b2:   resident
        ],
        out_specs=pl.BlockSpec((tn, C), lambda i: (i, 0)),
        compiler_params=pltpu.CompilerParams(
            dimension_semantics=("parallel",),         # megacore-shard the N axis
            vmem_limit_bytes=32 * 1024 * 1024,         # safe on v5e/v6e/v7x
        ),
        cost_estimate=cost,
    )(x_in, w1t, b1_2d, w2t, b2_2d)

    return out


if __name__ == "__main__":
    # Small shapes consistent with the module: x is (N, in_channels).
    # C = 128 keeps output stores lane-dense; N = 512 gives grid=(4,) with no padding.
    N = 512
    in_channels = 128
    latent_dim = 32

    key = jax.random.PRNGKey(0)
    kx, kw1, kb1, kw2, kb2 = jax.random.split(key, 5)

    x = jax.random.normal(kx, (N, in_channels), dtype=jnp.float32)

    # nn.Linear-style init (shapes match the PyTorch module exactly).
    bound1 = 1.0 / jnp.sqrt(in_channels)
    w1 = jax.random.uniform(kw1, (latent_dim, in_channels), jnp.float32, -bound1, bound1)
    b1 = jax.random.uniform(kb1, (latent_dim,), jnp.float32, -bound1, bound1)

    bound2 = 1.0 / jnp.sqrt(latent_dim)
    w2 = jax.random.uniform(kw2, (in_channels, latent_dim), jnp.float32, -bound2, bound2)
    b2 = jax.random.uniform(kb2, (in_channels,), jnp.float32, -bound2, bound2)

    # Pure-JAX reference (same math as the PyTorch forward).
    h = x @ w1.T + b1
    z = jnp.where(h > 0, h, 0.01 * h)
    ref = z @ w2.T + b2

    # f32 path (bit-accurate vs the f32 reference)
    out_f32 = simple_autoencoder_forward(x, w1, b1, w2, b2, tile_n=2048, use_bf16=False)
    out_f32 = jax.block_until_ready(out_f32)
    assert out_f32.shape == (N, in_channels)
    assert jnp.allclose(out_f32, ref, atol=2e-3, rtol=2e-3), \
        float(jnp.max(jnp.abs(out_f32 - ref)))

    # bf16-stream path (halves HBM read traffic; looser tolerance vs f32 reference)
    out_bf16 = simple_autoencoder_forward(x, w1, b1, w2, b2, tile_n=2048, use_bf16=True)
    out_bf16 = jax.block_until_ready(out_bf16)
    assert out_bf16.shape == (N, in_channels)
    assert jnp.allclose(out_bf16, ref, atol=5e-2, rtol=5e-2), \
        float(jnp.max(jnp.abs(out_bf16 - ref)))

    print("KERNEL_OK")
</pallas_src>

<mosaic_0001>
module attributes {stable_mosaic.version = 11 : i64} {
  func.func @_autoencoder_kernel(%arg0: i32, %arg1: memref<128x128xf32, #tpu.memory_space<vmem>>, %arg2: memref<128x32xf32, #tpu.memory_space<vmem>>, %arg3: memref<1x32xf32, #tpu.memory_space<vmem>>, %arg4: memref<32x128xf32, #tpu.memory_space<vmem>>, %arg5: memref<1x128xf32, #tpu.memory_space<vmem>>, %arg6: memref<128x128xf32, #tpu.memory_space<vmem>>) attributes {dimension_semantics = [#tpu.dimension_semantics<parallel>], iteration_bounds = array<i64: 4>, scalar_prefetch = 0 : i64, scratch_operands = 0 : i64, tpu.core_type = #tpu.core_type<tc>, window_params = [{transform_indices = @transform_0, window_bounds = array<i64: 128, 128>}, {pipeline_mode = #tpu.pipeline_mode<synchronous>, transform_indices = @transform_1, window_bounds = array<i64: 128, 32>}, {pipeline_mode = #tpu.pipeline_mode<synchronous>, transform_indices = @transform_2, window_bounds = array<i64: 1, 32>}, {pipeline_mode = #tpu.pipeline_mode<synchronous>, transform_indices = @transform_3, window_bounds = array<i64: 32, 128>}, {pipeline_mode = #tpu.pipeline_mode<synchronous>, transform_indices = @transform_4, window_bounds = array<i64: 1, 128>}, {transform_indices = @transform_5, window_bounds = array<i64: 128, 128>}]} {
    %c0 = arith.constant 0 : index
    %c0_0 = arith.constant 0 : index
    %0 = vector.load %arg1[%c0, %c0_0] : memref<128x128xf32, #tpu.memory_space<vmem>>, vector<128x128xf32>
    %c0_1 = arith.constant 0 : index
    %c0_2 = arith.constant 0 : index
    %1 = vector.load %arg2[%c0_1, %c0_2] : memref<128x32xf32, #tpu.memory_space<vmem>>, vector<128x32xf32>
    %cst = arith.constant dense<0.000000e+00> : vector<128x32xf32>
    %2 = tpu.matmul %0, %1, %cst {dimension_numbers = #tpu.dot_dimension_numbers<[1], [0], [0], [1], [0, 0, 1, 1], [], []>} : vector<128x128xf32>, vector<128x32xf32>, vector<128x32xf32> -> vector<128x32xf32>
    %c0_3 = arith.constant 0 : index
    %c0_4 = arith.constant 0 : index
    %3 = vector.load %arg3[%c0_3, %c0_4] : memref<1x32xf32, #tpu.memory_space<vmem>>, vector<1x32xf32>
    %4 = vector.broadcast %3 : vector<1x32xf32> to vector<128x32xf32>
    %5 = arith.addf %2, %4 : vector<128x32xf32>
    %cst_5 = arith.constant 0.000000e+00 : f32
    %6 = vector.broadcast %cst_5 : f32 to vector<128x32xf32>
    %7 = arith.cmpf ogt, %5, %6 : vector<128x32xf32>
    %cst_6 = arith.constant 0.00999999977 : f32
    %8 = vector.broadcast %cst_6 : f32 to vector<128x32xf32>
    %9 = arith.mulf %8, %5 : vector<128x32xf32>
    %10 = arith.select %7, %5, %9 : vector<128x32xi1>, vector<128x32xf32>
    %c0_7 = arith.constant 0 : index
    %c0_8 = arith.constant 0 : index
    %11 = vector.load %arg4[%c0_7, %c0_8] : memref<32x128xf32, #tpu.memory_space<vmem>>, vector<32x128xf32>
    %cst_9 = arith.constant dense<0.000000e+00> : vector<128x128xf32>
    %12 = tpu.matmul %10, %11, %cst_9 {dimension_numbers = #tpu.dot_dimension_numbers<[1], [0], [0], [1], [0, 0, 1, 1], [], []>} : vector<128x32xf32>, vector<32x128xf32>, vector<128x128xf32> -> vector<128x128xf32>
    %c0_10 = arith.constant 0 : index
    %c0_11 = arith.constant 0 : index
    %13 = vector.load %arg5[%c0_10, %c0_11] : memref<1x128xf32, #tpu.memory_space<vmem>>, vector<1x128xf32>
    %14 = vector.broadcast %13 : vector<1x128xf32> to vector<128x128xf32>
    %15 = arith.addf %12, %14 : vector<128x128xf32>
    %c0_12 = arith.constant 0 : index
    %c0_13 = arith.constant 0 : index
    %16 = vector.load %arg6[%c0_12, %c0_13] : memref<128x128xf32, #tpu.memory_space<vmem>>, vector<128x128xf32>
    tpu.vector_store %arg6[%c0_12, %c0_13], %15 {strides = array<i32>} : memref<128x128xf32, #tpu.memory_space<vmem>>, vector<128x128xf32>,
    return
  }
  func.func @transform_0(%arg0: i32) -> (i32, i32) {
    %c0_i32 = arith.constant 0 : i32
    %c0_i32_0 = arith.constant 0 : i32
    return %arg0, %c0_i32 : i32, i32
  }
  func.func @transform_1(%arg0: i32) -> (i32, i32) {
    %c0_i32 = arith.constant 0 : i32
    %c0_i32_0 = arith.constant 0 : i32
    %c0_i32_1 = arith.constant 0 : i32
    return %c0_i32, %c0_i32_0 : i32, i32
  }
  func.func @transform_2(%arg0: i32) -> (i32, i32) {
    %c0_i32 = arith.constant 0 : i32
    %c0_i32_0 = arith.constant 0 : i32
    %c0_i32_1 = arith.constant 0 : i32
    return %c0_i32, %c0_i32_0 : i32, i32
  }
  func.func @transform_3(%arg0: i32) -> (i32, i32) {
    %c0_i32 = arith.constant 0 : i32
    %c0_i32_0 = arith.constant 0 : i32
    %c0_i32_1 = arith.constant 0 : i32
    return %c0_i32, %c0_i32_0 : i32, i32
  }
  func.func @transform_4(%arg0: i32) -> (i32, i32) {
    %c0_i32 = arith.constant 0 : i32
    %c0_i32_0 = arith.constant 0 : i32
    %c0_i32_1 = arith.constant 0 : i32
    return %c0_i32, %c0_i32_0 : i32, i32
  }
  func.func @transform_5(%arg0: i32) -> (i32, i32) {
    %c0_i32 = arith.constant 0 : i32
    %c0_i32_0 = arith.constant 0 : i32
    return %arg0, %c0_i32 : i32, i32
  }
}

</mosaic_0001>

<llo_original>
// kernel: tpu_custom_call.1
$region0: #{tpu_custom_call.1}
  #allocation0 [shape = 'u32[]', space=smem, size = 0x4, offset = 0x4, fixed_abs, tag = 'smem constant byte address 0x4 - core index']
  #allocation1 [shape = 'u32[144,128]{1,0:T(1,128)}', space=vmem, size = 0x12000, scoped, tag = 'internal scratch']
  %s0 = inlined_call_operand.hbm [shape: f32[512,128], index: 0, kind: input, shape index: {}]
  %s1 = inlined_call_operand.vmem [shape: f32[128,32], index: 1, kind: input, shape index: {}]
  %s2 = inlined_call_operand.vmem [shape: f32[1,32], index: 2, kind: input, shape index: {}]
  %s3 = inlined_call_operand.vmem [shape: f32[32,128], index: 3, kind: input, shape index: {}]
  %s4 = inlined_call_operand.vmem [shape: f32[1,128], index: 4, kind: input, shape index: {}]
  %s5 = inlined_call_operand.hbm [shape: f32[512,128], index: 5, kind: output, shape index: {}]
  %s6 = sld [smem:[#allocation0]]
  $region57: #{tpu_custom_call.1} parent=0
    _
  %s8 = ssub.s32 1, %s6
  %s9 = scalar_select 0, %s8, %s6
  $region1: #{tpu_custom_call.1} parent=0
    #allocation2 [shape = 'u8[131072]{0}', space=vmem, size = 0x20000, scoped, tag = 'input window, operand 0']
    #allocation3 [shape = 's32[2]{0}', space=sflag, size = 0x8, scoped, tag = 'scoped memory for tpu_custom_call.1']
    #allocation4 [shape = 's32[2]{0}', space=sflag, size = 0x8, scoped, tag = 'scoped memory for tpu_custom_call.1']
    #allocation5 [shape = 'u8[131072]{0}', space=vmem, size = 0x20000, scoped, tag = 'output window, operand 0']
    %10 = vsyncpa [#allocation3], 0
    %s11 = scalar_lea.sflag [#allocation3], 1
    %12 = vsyncpa %s11, 0
    %13 = vsyncpa [#allocation4], 0
    %s14 = scalar_lea.sflag [#allocation4], 1
    %15 = vsyncpa %s14, 0
    loop: start=0, step=1, limit=6
    $region2: #{tpu_custom_call.1} parent=1 // loop_pre_header
      _
    $region3: #{tpu_custom_call.1} parent=1 // loop_header
      %s17 = sphi 0, %s21
      %p18 = scmp.ge.s32.totalorder %s17, 6
      %s27 = sphi 0, %s29
      %s30 = sphi 0, %s27
      %s31 = sphi 0, %s30
      %s47 = sphi 0, %s31
      %s51 = sphi 0, %s51
      %s53 = sphi 0, %s51
      %s54 = sphi 0, %s53
      %s68 = sphi 0, %s54
      %s72 = sphi 0, %s72
      %s74 = sphi 0, %s72
      %s75 = sphi 0, %s74
      %s89 = sphi 0, %s75
      %s93 = sphi 0, %s93
      %s95 = sphi 0, %s93
      %s96 = sphi 0, %s95
      %s110 = sphi 0, %s96
      %s114 = sphi 0, %s114
      %s116 = sphi 0, %s114
      %s117 = sphi 0, %s116
      %s131 = sphi 0, %s117
      %s137 = sphi 0, %s139
      %s140 = sphi 0, %s137
      %s141 = sphi 0, %s140
      %s157 = sphi 0, %s141
    $region4: #{tpu_custom_call.1} parent=1 // loop_header_branch
      %20 = sbr.rel (%p18) target = $region8
    $region5: #{tpu_custom_call.1} parent=1 // loop_body
      %s22 = ssub.s32 %s17, 1
      %s23 = ssub.s32 %s17, 2
      %s24 = sadd.s32 %s17, 1
      %s25 = ssub.s32 %s17, %s24
      %p26 = scmp.eq.s32.totalorder %s25, 0
      %s28 = sadd.s32 %s27, 1
      %s29 = scalar_select %p26, %s27, %s28
      %p32 = pneg %p26
      %p33 = scmp.eq.s32.totalorder %s17, 3
      %p34 = por %p32, %p33
      %p35 = scmp.ne.s32.totalorder %s27, %s30
      %p36 = scmp.eq.s32.totalorder %s17, 0
      %p37 = por %p35, %p36
      %p38 = scmp.ne.s32.totalorder %s27, %s30
      %p39 = scmp.eq.s32.totalorder %s22, 3
      %p40 = por %p38, %p39
      %p41 = scmp.ne.s32.totalorder %s30, %s31
      %p42 = scmp.eq.s32.totalorder %s22, 0
      %p43 = por %p41, %p42
      %p44 = scmp.ne.s32.totalorder %s30, %s31
      %p45 = scmp.eq.s32.totalorder %s23, 3
      %p46 = por %p44, %p45
      %p48 = scmp.ne.s32.totalorder %s31, %s47
      %p49 = scmp.eq.s32.totalorder %s23, 0
      %p50 = por %p48, %p49
      %s52 = sadd.s32 %s51, 1
      %p55 = scmp.eq.s32.totalorder %s17, 3
      %p56 = scmp.ne.s32.totalorder %s51, %s53
      %p57 = scmp.eq.s32.totalorder %s17, 0
      %p58 = por %p56, %p57
      %p59 = scmp.ne.s32.totalorder %s51, %s53
      %p60 = scmp.eq.s32.totalorder %s22, 3
      %p61 = por %p59, %p60
      %p62 = scmp.ne.s32.totalorder %s53, %s54
      %p63 = scmp.eq.s32.totalorder %s22, 0
      %p64 = por %p62, %p63
      %p65 = scmp.ne.s32.totalorder %s53, %s54
      %p66 = scmp.eq.s32.totalorder %s23, 3
      %p67 = por %p65, %p66
      %p69 = scmp.ne.s32.totalorder %s54, %s68
      %p70 = scmp.eq.s32.totalorder %s23, 0
      %p71 = por %p69, %p70
      %s73 = sadd.s32 %s72, 1
      %p76 = scmp.eq.s32.totalorder %s17, 3
      %p77 = scmp.ne.s32.totalorder %s72, %s74
      %p78 = scmp.eq.s32.totalorder %s17, 0
      %p79 = por %p77, %p78
      %p80 = scmp.ne.s32.totalorder %s72, %s74
      %p81 = scmp.eq.s32.totalorder %s22, 3
      %p82 = por %p80, %p81
      %p83 = scmp.ne.s32.totalorder %s74, %s75
      %p84 = scmp.eq.s32.totalorder %s22, 0
      %p85 = por %p83, %p84
      %p86 = scmp.ne.s32.totalorder %s74, %s75
      %p87 = scmp.eq.s32.totalorder %s23, 3
      %p88 = por %p86, %p87
      %p90 = scmp.ne.s32.totalorder %s75, %s89
      %p91 = scmp.eq.s32.totalorder %s23, 0
      %p92 = por %p90, %p91
      %s94 = sadd.s32 %s93, 1
      %p97 = scmp.eq.s32.totalorder %s17, 3
      %p98 = scmp.ne.s32.totalorder %s93, %s95
      %p99 = scmp.eq.s32.totalorder %s17, 0
      %p100 = por %p98, %p99
      %p101 = scmp.ne.s32.totalorder %s93, %s95
      %p102 = scmp.eq.s32.totalorder %s22, 3
      %p103 = por %p101, %p102
      %p104 = scmp.ne.s32.totalorder %s95, %s96
      %p105 = scmp.eq.s32.totalorder %s22, 0
      %p106 = por %p104, %p105
      %p107 = scmp.ne.s32.totalorder %s95, %s96
      %p108 = scmp.eq.s32.totalorder %s23, 3
      %p109 = por %p107, %p108
      %p111 = scmp.ne.s32.totalorder %s96, %s110
      %p112 = scmp.eq.s32.totalorder %s23, 0
      %p113 = por %p111, %p112
      %s115 = sadd.s32 %s114, 1
      %p118 = scmp.eq.s32.totalorder %s17, 3
      %p119 = scmp.ne.s32.totalorder %s114, %s116
      %p120 = scmp.eq.s32.totalorder %s17, 0
      %p121 = por %p119, %p120
      %p122 = scmp.ne.s32.totalorder %s114, %s116
      %p123 = scmp.eq.s32.totalorder %s22, 3
      %p124 = por %p122, %p123
      %p125 = scmp.ne.s32.totalorder %s116, %s117
      %p126 = scmp.eq.s32.totalorder %s22, 0
      %p127 = por %p125, %p126
      %p128 = scmp.ne.s32.totalorder %s116, %s117
      %p129 = scmp.eq.s32.totalorder %s23, 3
      %p130 = por %p128, %p129
      %p132 = scmp.ne.s32.totalorder %s117, %s131
      %p133 = scmp.eq.s32.totalorder %s23, 0
      %p134 = por %p132, %p133
      %s135 = ssub.s32 %s17, %s24
      %p136 = scmp.eq.s32.totalorder %s135, 0
      %s138 = sadd.s32 %s137, 1
      %s139 = scalar_select %p136, %s137, %s138
      %p142 = pneg %p136
      %p143 = scmp.eq.s32.totalorder %s17, 3
      %p144 = por %p142, %p143
      %p145 = scmp.ne.s32.totalorder %s137, %s140
      %p146 = scmp.eq.s32.totalorder %s17, 0
      %p147 = por %p145, %p146
      %p148 = scmp.ne.s32.totalorder %s137, %s140
      %p149 = scmp.eq.s32.totalorder %s22, 3
      %p150 = por %p148, %p149
      %p151 = scmp.ne.s32.totalorder %s140, %s141
      %p152 = scmp.eq.s32.totalorder %s22, 0
      %p153 = por %p151, %p152
      %p154 = scmp.ne.s32.totalorder %s140, %s141
      %p155 = scmp.eq.s32.totalorder %s23, 3
      %p156 = por %p154, %p155
      %p158 = scmp.ne.s32.totalorder %s141, %s157
      %p159 = scmp.eq.s32.totalorder %s23, 0
      %p160 = por %p158, %p159
      %p161 = scmp.le.s32.totalorder 1, %s17
      %p162 = scmp.lt.s32.totalorder %s17, 5
      %p163 = pnand %p161, %p162
      %p164 = pneg %p163
      // Predicated region
      $region9: #{tpu_custom_call.1} parent=5 // pred_check
        _
      $region10: #{tpu_custom_call.1} parent=5 // pred_check_branch
        %166 = sbr.rel (%p163) target = $region12
      $region11: #{tpu_custom_call.1} parent=5 // pred_region
        %s167 = ssub.s32 %s17, 1
        // Predicated region
        $region13: #{tpu_custom_call.1} parent=11 // pred_check
          %p168 = pneg %p64
        $region14: #{tpu_custom_call.1} parent=11 // pred_check_branch
          %170 = sbr.rel (%p168) target = $region16
        $region15: #{tpu_custom_call.1} parent=11 // pred_region
          _
        $region16: #{tpu_custom_call.1} parent=11 // pred_fallthru
          _
        // Predicated region
        $region17: #{tpu_custom_call.1} parent=11 // pred_check
          %p171 = pneg %p85
        $region18: #{tpu_custom_call.1} parent=11 // pred_check_branch
          %173 = sbr.rel (%p171) target = $region20
        $region19: #{tpu_custom_call.1} parent=11 // pred_region
          _
        $region20: #{tpu_custom_call.1} parent=11 // pred_fallthru
          _
        // Predicated region
        $region21: #{tpu_custom_call.1} parent=11 // pred_check
          %p174 = pneg %p106
        $region22: #{tpu_custom_call.1} parent=11 // pred_check_branch
          %176 = sbr.rel (%p174) target = $region24
        $region23: #{tpu_custom_call.1} parent=11 // pred_region
          _
        $region24: #{tpu_custom_call.1} parent=11 // pred_fallthru
          _
        // Predicated region
        $region25: #{tpu_custom_call.1} parent=11 // pred_check
          %p177 = pneg %p127
        $region26: #{tpu_custom_call.1} parent=11 // pred_check_branch
          %179 = sbr.rel (%p177) target = $region28
        $region27: #{tpu_custom_call.1} parent=11 // pred_region
          _
        $region28: #{tpu_custom_call.1} parent=11 // pred_fallthru
          _
      $region12: #{tpu_custom_call.1} parent=5 // pred_fallthru
        _
      %p180 = scmp.lt.s32.totalorder %s17, 4
      // Predicated region
      $region29: #{tpu_custom_call.1} parent=5 // pred_check
        %p181 = pneg %p180
      $region30: #{tpu_custom_call.1} parent=5 // pred_check_branch
        %183 = sbr.rel (%p181) target = $region32
      $region31: #{tpu_custom_call.1} parent=5 // pred_region
        // Predicated region
        $region33: #{tpu_custom_call.1} parent=31 // pred_check
          %p184 = pneg %p37
        $region34: #{tpu_custom_call.1} parent=31 // pred_check_branch
          %186 = sbr.rel (%p184) target = $region36
        $region35: #{tpu_custom_call.1} parent=31 // pred_region
          %s187 = sand.u32 %s27, 1
          %s188 = scalar_lea.sflag [#allocation3], %s187
          %s189 = sand.u32 %s27, 1
          %s190 = smul.addr %s189, 128
          %s191 = scalar_lea.vmem [#allocation2], %s190
          %s192 = smul.u32 16, %s17
          %s194 = ssub.s32 2048, 2048
          %195 = vsyncadd %s188, %s194
          %s196 = smul.addr %s192, 128
          %s197 = scalar_lea.hbm %s0, %s196
          %s198 = sshll.u32 %s191, 4
          %s199 = int_to_ptr.vmem [resolvable:$true] %s198
          %204 = dma.hbm_to_vmem [thread:$0]  %s197, 2048, %s199, %s188, 128, 128, 8
        $region36: #{tpu_custom_call.1} parent=31 // pred_fallthru
          _
      $region32: #{tpu_custom_call.1} parent=5 // pred_fallthru
        _
      %p205 = scmp.le.s32.totalorder 1, %s17
      %p206 = scmp.lt.s32.totalorder %s17, 5
      %p207 = pnand %p205, %p206
      %p208 = pneg %p207
      // Predicated region
      $region37: #{tpu_custom_call.1} parent=5 // pred_check
        _
      $region38: #{tpu_custom_call.1} parent=5 // pred_check_branch
        %210 = sbr.rel (%p207) target = $region40
      $region39: #{tpu_custom_call.1} parent=5 // pred_region
        %s211 = ssub.s32 %s17, 1
        %s212 = sand.u32 %s30, 1
        %s213 = scalar_lea.sflag [#allocation3], %s212
        %s214 = sand.u32 %s30, 1
        %s215 = smul.addr %s214, 128
        %s216 = scalar_lea.vmem [#allocation2], %s215
        // Predicated region
        $region41: #{tpu_custom_call.1} parent=39 // pred_check
          %p217 = pneg %p43
        $region42: #{tpu_custom_call.1} parent=39 // pred_check_branch
          %219 = sbr.rel (%p217) target = $region44
        $region43: #{tpu_custom_call.1} parent=39 // pred_region
          %220 = dma.done %s213, 2048
        $region44: #{tpu_custom_call.1} parent=39 // pred_fallthru
          _
        %s221 = sand.u32 %s30, 1
        %s222 = scalar_lea.sflag [#allocation3], %s221
        %s223 = sand.u32 %s30, 1
        %s224 = smul.addr %s223, 128
        %s225 = scalar_lea.vmem [#allocation2], %s224
        %p226 = pneg %p43
        %p227 = pneg %p40
        %p228 = pneg %p64
        %p229 = pneg %p61
        %p230 = pneg %p85
        %p231 = pneg %p82
        %p232 = pneg %p106
        %p233 = pneg %p103
        %p234 = pneg %p127
        %p235 = pneg %p124
        %p236 = pneg %p153
        %p237 = pneg %p150
        %s238 = sand.u32 %s140, 1
        %s239 = scalar_lea.sflag [#allocation4], %s238
        %s240 = sand.u32 %s140, 1
        %s241 = smul.addr %s240, 128
        %s242 = scalar_lea.vmem [#allocation5], %s241
        %s243 = smul.u32 16, %s22
        %s244 = smul.u32 16, %s22
        %v245 = vld [vmem:[%s216] sm:$0xff]
        %v246 = vld [vmem:[%s216 + $0x8] sm:$0xff]
        %v247 = vld [vmem:[%s216 + $0x10] sm:$0xff]
        %v248 = vld [vmem:[%s216 + $0x18] sm:$0xff]
        %v249 = vld [vmem:[%s216 + $0x20] sm:$0xff]
        %v250 = vld [vmem:[%s216 + $0x28] sm:$0xff]
        %v251 = vld [vmem:[%s216 + $0x30] sm:$0xff]
        %v252 = vld [vmem:[%s216 + $0x38] sm:$0xff]
        %v253 = vld [vmem:[%s216 + $0x40] sm:$0xff]
        %v254 = vld [vmem:[%s216 + $0x48] sm:$0xff]
        %v255 = vld [vmem:[%s216 + $0x50] sm:$0xff]
        %v256 = vld [vmem:[%s216 + $0x58] sm:$0xff]
        %v257 = vld [vmem:[%s216 + $0x60] sm:$0xff]
        %v258 = vld [vmem:[%s216 + $0x68] sm:$0xff]
        %v259 = vld [vmem:[%s216 + $0x70] sm:$0xff]
        %v260 = vld [vmem:[%s216 + $0x78] sm:$0xff]
        %v261 = vld [vmem:[%s1] sm:$0xff]
        %v262 = vld [vmem:[%s1 + $0x8] sm:$0xff]
        %v263 = vld [vmem:[%s1 + $0x10] sm:$0xff]
        %v264 = vld [vmem:[%s1 + $0x18] sm:$0xff]
        %v265 = vld [vmem:[%s1 + $0x20] sm:$0xff]
        %v266 = vld [vmem:[%s1 + $0x28] sm:$0xff]
        %v267 = vld [vmem:[%s1 + $0x30] sm:$0xff]
        %v268 = vld [vmem:[%s1 + $0x38] sm:$0xff]
        %v269 = vld [vmem:[%s1 + $0x40] sm:$0xff]
        %v270 = vld [vmem:[%s1 + $0x48] sm:$0xff]
        %v271 = vld [vmem:[%s1 + $0x50] sm:$0xff]
        %v272 = vld [vmem:[%s1 + $0x58] sm:$0xff]
        %v273 = vld [vmem:[%s1 + $0x60] sm:$0xff]
        %v274 = vld [vmem:[%s1 + $0x68] sm:$0xff]
        %v275 = vld [vmem:[%s1 + $0x70] sm:$0xff]
        %v276 = vld [vmem:[%s1 + $0x78] sm:$0xff]
        %v277 = vld [vmem:[%s2] sm:$0x1]
        %v279 = vlaneseq
        %v280 = vshrl.u32 %v279, 7
        %v281 = vsub.s32 0, %v280
        %v282 = vrot.slane %v277, %v281
        %284 = vmatprep.subr.mxu0 0.0
        %285 = vmatpush1.msra.mxu0 %v261
        %286 = vmatprep.subr.mxu0 0.0
        %287 = vmatpush1.msra.mxu0 %v262
        %288 = vmatprep.subr.mxu0 0.0
        %289 = vmatpush1.msra.mxu0 %v263
        %290 = vmatprep.subr.mxu0 0.0
        %291 = vmatpush1.msra.mxu0 %v264
        %292 = vmatprep.subr.mxu0 0.0
        %293 = vmatpush1.msra.mxu0 %v265
        %294 = vmatprep.subr.mxu0 0.0
        %295 = vmatpush1.msra.mxu0 %v266
        %296 = vmatprep.subr.mxu0 0.0
        %297 = vmatpush1.msra.mxu0 %v267
        %298 = vmatprep.subr.mxu0 0.0
        %299 = vmatpush1.msra.mxu0 %v268
        %300 = vmatprep.subr.mxu0 0.0
        %301 = vmatpush1.msra.mxu0 %v269
        %302 = vmatprep.subr.mxu0 0.0
        %303 = vmatpush1.msra.mxu0 %v270
        %304 = vmatprep.subr.mxu0 0.0
        %305 = vmatpush1.msra.mxu0 %v271
        %306 = vmatprep.subr.mxu0 0.0
        %307 = vmatpush1.msra.mxu0 %v272
        %308 = vmatprep.subr.mxu0 0.0
        %309 = vmatpush1.msra.mxu0 %v273
        %310 = vmatprep.subr.mxu0 0.0
        %311 = vmatpush1.msra.mxu0 %v274
        %312 = vmatprep.subr.mxu0 0.0
        %313 = vmatpush1.msra.mxu0 %v275
        %314 = vmatprep.subr.mxu0 0.0
        %315 = vmatpush1.msra.mxu0 %v276
        %316 = vmatprep.subr.mxu0 0.0
        %317 = vmatpush1.msra.mxu0 0.0
        %318 = vmatprep.subr.mxu0 0.0
        %319 = vmatpush1.msra.mxu0 0.0
        %320 = vmatprep.subr.mxu0 0.0
        %321 = vmatpush1.msra.mxu0 0.0
        %322 = vmatprep.subr.mxu0 0.0
        %323 = vmatpush1.msra.mxu0 0.0
        %324 = vmatprep.subr.mxu0 0.0
        %325 = vmatpush1.msra.mxu0 0.0
        %326 = vmatprep.subr.mxu0 0.0
        %327 = vmatpush1.msra.mxu0 0.0
        %328 = vmatprep.subr.mxu0 0.0
        %329 = vmatpush1.msra.mxu0 0.0
        %330 = vmatprep.subr.mxu0 0.0
        %331 = vmatpush1.msra.mxu0 0.0
        %332 = vmatprep.subr.mxu0 0.0
        %333 = vmatpush1.msra.mxu0 0.0
        %334 = vmatprep.subr.mxu0 0.0
        %335 = vmatpush1.msra.mxu0 0.0
        %336 = vmatprep.subr.mxu0 0.0
        %337 = vmatpush1.msra.mxu0 0.0
        %338 = vmatprep.subr.mxu0 0.0
        %339 = vmatpush1.msra.mxu0 0.0
        %340 = vmatprep.subr.mxu0 0.0
        %341 = vmatpush1.msra.mxu0 0.0
        %342 = vmatprep.subr.mxu0 0.0
        %343 = vmatpush1.msra.mxu0 0.0
        %344 = vmatprep.subr.mxu0 0.0
        %345 = vmatpush1.msra.mxu0 0.0
        %346 = vmatprep.subr.mxu0 0.0
        %347 = vmatpush1.msra.mxu0 0.0
        %348 = vmatprep.mubr.f32.mxu0 0.0
        %349 = vmatmul.mubr.f32.gmra.mrb[0].mxu0 %v245
        %v350 = vpop.f32.mrb[0].mxu0
        %v351 = vadd.f32 %v282, %v350
        %v352 = vpop.f32.mrb[0].mxu0
        %353 = vmatprep.mubr.f32.mxu0 0.0
        %354 = vmatmul.mubr.f32.gmra.mrb[0].mxu0 %v246
        %v355 = vpop.f32.mrb[0].mxu0
        %v356 = vadd.f32 %v282, %v355
        %v357 = vpop.f32.mrb[0].mxu0
        %358 = vmatprep.mubr.f32.mxu0 0.0
        %359 = vmatmul.mubr.f32.gmra.mrb[0].mxu0 %v247
        %v360 = vpop.f32.mrb[0].mxu0
        %v361 = vadd.f32 %v282, %v360
        %v362 = vpop.f32.mrb[0].mxu0
        %363 = vmatprep.mubr.f32.mxu0 0.0
        %364 = vmatmul.mubr.f32.gmra.mrb[0].mxu0 %v248
        %v365 = vpop.f32.mrb[0].mxu0
        %v366 = vadd.f32 %v282, %v365
        %v367 = vpop.f32.mrb[0].mxu0
        %368 = vmatprep.mubr.f32.mxu0 0.0
        %369 = vmatmul.mubr.f32.gmra.mrb[0].mxu0 %v249
        %v370 = vpop.f32.mrb[0].mxu0
        %v371 = vadd.f32 %v282, %v370
        %v372 = vpop.f32.mrb[0].mxu0
        %373 = vmatprep.mubr.f32.mxu0 0.0
        %374 = vmatmul.mubr.f32.gmra.mrb[0].mxu0 %v250
        %v375 = vpop.f32.mrb[0].mxu0
        %v376 = vadd.f32 %v282, %v375
        %v377 = vpop.f32.mrb[0].mxu0
        %378 = vmatprep.mubr.f32.mxu0 0.0
        %379 = vmatmul.mubr.f32.gmra.mrb[0].mxu0 %v251
        %v380 = vpop.f32.mrb[0].mxu0
        %v381 = vadd.f32 %v282, %v380
        %v382 = vpop.f32.mrb[0].mxu0
        %383 = vmatprep.mubr.f32.mxu0 0.0
        %384 = vmatmul.mubr.f32.gmra.mrb[0].mxu0 %v252
        %v385 = vpop.f32.mrb[0].mxu0
        %v386 = vadd.f32 %v282, %v385
        %v387 = vpop.f32.mrb[0].mxu0
        %388 = vmatprep.mubr.f32.mxu0 0.0
        %389 = vmatmul.mubr.f32.gmra.mrb[0].mxu0 %v253
        %v390 = vpop.f32.mrb[0].mxu0
        %v391 = vadd.f32 %v282, %v390
        %v392 = vpop.f32.mrb[0].mxu0
        %393 = vmatprep.mubr.f32.mxu0 0.0
        %394 = vmatmul.mubr.f32.gmra.mrb[0].mxu0 %v254
        %v395 = vpop.f32.mrb[0].mxu0
        %v396 = vadd.f32 %v282, %v395
        %v397 = vpop.f32.mrb[0].mxu0
        %398 = vmatprep.mubr.f32.mxu0 0.0
        %399 = vmatmul.mubr.f32.gmra.mrb[0].mxu0 %v255
        %v400 = vpop.f32.mrb[0].mxu0
        %v401 = vadd.f32 %v282, %v400
        %v402 = vpop.f32.mrb[0].mxu0
        %403 = vmatprep.mubr.f32.mxu0 0.0
        %404 = vmatmul.mubr.f32.gmra.mrb[0].mxu0 %v256
        %v405 = vpop.f32.mrb[0].mxu0
        %v406 = vadd.f32 %v282, %v405
        %v407 = vpop.f32.mrb[0].mxu0
        %408 = vmatprep.mubr.f32.mxu0 0.0
        %409 = vmatmul.mubr.f32.gmra.mrb[0].mxu0 %v257
        %v410 = vpop.f32.mrb[0].mxu0
        %v411 = vadd.f32 %v282, %v410
        %v412 = vpop.f32.mrb[0].mxu0
        %413 = vmatprep.mubr.f32.mxu0 0.0
        %414 = vmatmul.mubr.f32.gmra.mrb[0].mxu0 %v258
        %v415 = vpop.f32.mrb[0].mxu0
        %v416 = vadd.f32 %v282, %v415
        %v417 = vpop.f32.mrb[0].mxu0
        %418 = vmatprep.mubr.f32.mxu0 0.0
        %419 = vmatmul.mubr.f32.gmra.mrb[0].mxu0 %v259
        %v420 = vpop.f32.mrb[0].mxu0
        %v421 = vadd.f32 %v282, %v420
        %v422 = vpop.f32.mrb[0].mxu0
        %423 = vmatprep.mubr.f32.mxu0 0.0
        %424 = vmatmul.mubr.f32.gmra.mrb[0].mxu0 %v260
        %v425 = vpop.f32.mrb[0].mxu0
        %v426 = vadd.f32 %v282, %v425
        %v427 = vpop.f32.mrb[0].mxu0
        %428 = vdwg.mxu0
        %vm429 = vcmp.gt.f32.partialorder %v351, 0.0
        %vm430 = vcmp.gt.f32.partialorder %v356, 0.0
        %vm431 = vcmp.gt.f32.partialorder %v361, 0.0
        %vm432 = vcmp.gt.f32.partialorder %v366, 0.0
        %vm433 = vcmp.gt.f32.partialorder %v371, 0.0
        %vm434 = vcmp.gt.f32.partialorder %v376, 0.0
        %vm435 = vcmp.gt.f32.partialorder %v381, 0.0
        %vm436 = vcmp.gt.f32.partialorder %v386, 0.0
        %vm437 = vcmp.gt.f32.partialorder %v391, 0.0
        %vm438 = vcmp.gt.f32.partialorder %v396, 0.0
        %vm439 = vcmp.gt.f32.partialorder %v401, 0.0
        %vm440 = vcmp.gt.f32.partialorder %v406, 0.0
        %vm441 = vcmp.gt.f32.partialorder %v411, 0.0
        %vm442 = vcmp.gt.f32.partialorder %v416, 0.0
        %vm443 = vcmp.gt.f32.partialorder %v421, 0.0
        %vm444 = vcmp.gt.f32.partialorder %v426, 0.0
        %v445 = vmul.f32 %v351, 0.01
        %v446 = vmul.f32 %v356, 0.01
        %v447 = vmul.f32 %v361, 0.01
        %v448 = vmul.f32 %v366, 0.01
        %v449 = vmul.f32 %v371, 0.01
        %v450 = vmul.f32 %v376, 0.01
        %v451 = vmul.f32 %v381, 0.01
        %v452 = vmul.f32 %v386, 0.01
        %v453 = vmul.f32 %v391, 0.01
        %v454 = vmul.f32 %v396, 0.01
        %v455 = vmul.f32 %v401, 0.01
        %v456 = vmul.f32 %v406, 0.01
        %v457 = vmul.f32 %v411, 0.01
        %v458 = vmul.f32 %v416, 0.01
        %v459 = vmul.f32 %v421, 0.01
        %v460 = vmul.f32 %v426, 0.01
        %v461 = vsel %vm429, %v351, %v445
        %v462 = vsel %vm430, %v356, %v446
        %v463 = vsel %vm431, %v361, %v447
        %v464 = vsel %vm432, %v366, %v448
        %v465 = vsel %vm433, %v371, %v449
        %v466 = vsel %vm434, %v376, %v450
        %v467 = vsel %vm435, %v381, %v451
        %v468 = vsel %vm436, %v386, %v452
        %v469 = vsel %vm437, %v391, %v453
        %v470 = vsel %vm438, %v396, %v454
        %v471 = vsel %vm439, %v401, %v455
        %v472 = vsel %vm440, %v406, %v456
        %v473 = vsel %vm441, %v411, %v457
        %v474 = vsel %vm442, %v416, %v458
        %v475 = vsel %vm443, %v421, %v459
        %v476 = vsel %vm444, %v426, %v460
        %v477 = vld [vmem:[%s3] sm:$0xff]
        %v478 = vld [vmem:[%s3 + $0x8] sm:$0xff]
        %v479 = vld [vmem:[%s3 + $0x10] sm:$0xff]
        %v480 = vld [vmem:[%s3 + $0x18] sm:$0xff]
        %v481 = vld [vmem:[%s4] sm:$0x1]
        %v483 = vlaneseq
        %v484 = vshrl.u32 %v483, 7
        %v485 = vsub.s32 0, %v484
        %v486 = vrot.slane %v481, %v485
        %vm488 = vcmask 261120
        %v490 = vsel %vm488, %v461, 0
        %v493 = vsel %vm488, %v462, 0
        %v496 = vsel %vm488, %v463, 0
        %v499 = vsel %vm488, %v464, 0
        %v502 = vsel %vm488, %v465, 0
        %v505 = vsel %vm488, %v466, 0
        %v508 = vsel %vm488, %v467, 0
        %v511 = vsel %vm488, %v468, 0
        %v514 = vsel %vm488, %v469, 0
        %v517 = vsel %vm488, %v470, 0
        %v520 = vsel %vm488, %v471, 0
        %v523 = vsel %vm488, %v472, 0
        %v526 = vsel %vm488, %v473, 0
        %v529 = vsel %vm488, %v474, 0
        %v532 = vsel %vm488, %v475, 0
        %v535 = vsel %vm488, %v476, 0
        %537 = vmatprep.subr.mxu0 0.0
        %538 = vmatpush1.msra.mxu0 %v477
        %539 = vmatprep.subr.mxu0 0.0
        %540 = vmatpush1.msra.mxu0 %v478
        %541 = vmatprep.subr.mxu0 0.0
        %542 = vmatpush1.msra.mxu0 %v479
        %543 = vmatprep.subr.mxu0 0.0
        %544 = vmatpush1.msra.mxu0 %v480
        %545 = vmatprep.subr.mxu0 0.0
        %546 = vmatpush1.msra.mxu0 0.0
        %547 = vmatprep.subr.mxu0 0.0
        %548 = vmatpush1.msra.mxu0 0.0
        %549 = vmatprep.subr.mxu0 0.0
        %550 = vmatpush1.msra.mxu0 0.0
        %551 = vmatprep.subr.mxu0 0.0
        %552 = vmatpush1.msra.mxu0 0.0
        %553 = vmatprep.subr.mxu0 0.0
        %554 = vmatpush1.msra.mxu0 0.0
        %555 = vmatprep.subr.mxu0 0.0
        %556 = vmatpush1.msra.mxu0 0.0
        %557 = vmatprep.subr.mxu0 0.0
        %558 = vmatpush1.msra.mxu0 0.0
        %559 = vmatprep.subr.mxu0 0.0
        %560 = vmatpush1.msra.mxu0 0.0
        %561 = vmatprep.subr.mxu0 0.0
        %562 = vmatpush1.msra.mxu0 0.0
        %563 = vmatprep.subr.mxu0 0.0
        %564 = vmatpush1.msra.mxu0 0.0
        %565 = vmatprep.subr.mxu0 0.0
        %566 = vmatpush1.msra.mxu0 0.0
        %567 = vmatprep.subr.mxu0 0.0
        %568 = vmatpush1.msra.mxu0 0.0
        %569 = vmatprep.subr.mxu0 0.0
        %570 = vmatpush1.msra.mxu0 0.0
        %571 = vmatprep.subr.mxu0 0.0
        %572 = vmatpush1.msra.mxu0 0.0
        %573 = vmatprep.subr.mxu0 0.0
        %574 = vmatpush1.msra.mxu0 0.0
        %575 = vmatprep.subr.mxu0 0.0
        %576 = vmatpush1.msra.mxu0 0.0
        %577 = vmatprep.subr.mxu0 0.0
        %578 = vmatpush1.msra.mxu0 0.0
        %579 = vmatprep.subr.mxu0 0.0
        %580 = vmatpush1.msra.mxu0 0.0
        %581 = vmatprep.subr.mxu0 0.0
        %582 = vmatpush1.msra.mxu0 0.0
        %583 = vmatprep.subr.mxu0 0.0
        %584 = vmatpush1.msra.mxu0 0.0
        %585 = vmatprep.subr.mxu0 0.0
        %586 = vmatpush1.msra.mxu0 0.0
        %587 = vmatprep.subr.mxu0 0.0
        %588 = vmatpush1.msra.mxu0 0.0
        %589 = vmatprep.subr.mxu0 0.0
        %590 = vmatpush1.msra.mxu0 0.0
        %591 = vmatprep.subr.mxu0 0.0
        %592 = vmatpush1.msra.mxu0 0.0
        %593 = vmatprep.subr.mxu0 0.0
        %594 = vmatpush1.msra.mxu0 0.0
        %595 = vmatprep.subr.mxu0 0.0
        %596 = vmatpush1.msra.mxu0 0.0
        %597 = vmatprep.subr.mxu0 0.0
        %598 = vmatpush1.msra.mxu0 0.0
        %599 = vmatprep.subr.mxu0 0.0
        %600 = vmatpush1.msra.mxu0 0.0
        %601 = vmatprep.mubr.f32.mxu0 0.0
        %602 = vmatmul.mubr.f32.gmra.mrb[0].mxu0 %v490
        %v603 = vpop.f32.mrb[0].mxu0
        %v604 = vadd.f32 %v486, %v603
        %v605 = vpop.f32.mrb[0].mxu0
        %606 = vmatprep.mubr.f32.mxu0 0.0
        %607 = vmatmul.mubr.f32.gmra.mrb[0].mxu0 %v493
        %v608 = vpop.f32.mrb[0].mxu0
        %v609 = vadd.f32 %v486, %v608
        %v610 = vpop.f32.mrb[0].mxu0
        %611 = vmatprep.mubr.f32.mxu0 0.0
        %612 = vmatmul.mubr.f32.gmra.mrb[0].mxu0 %v496
        %v613 = vpop.f32.mrb[0].mxu0
        %v614 = vadd.f32 %v486, %v613
        %v615 = vpop.f32.mrb[0].mxu0
        %616 = vmatprep.mubr.f32.mxu0 0.0
        %617 = vmatmul.mubr.f32.gmra.mrb[0].mxu0 %v499
        %v618 = vpop.f32.mrb[0].mxu0
        %v619 = vadd.f32 %v486, %v618
        %v620 = vpop.f32.mrb[0].mxu0
        %621 = vmatprep.mubr.f32.mxu0 0.0
        %622 = vmatmul.mubr.f32.gmra.mrb[0].mxu0 %v502
        %v623 = vpop.f32.mrb[0].mxu0
        %v624 = vadd.f32 %v486, %v623
        %v625 = vpop.f32.mrb[0].mxu0
        %626 = vmatprep.mubr.f32.mxu0 0.0
        %627 = vmatmul.mubr.f32.gmra.mrb[0].mxu0 %v505
        %v628 = vpop.f32.mrb[0].mxu0
        %v629 = vadd.f32 %v486, %v628
        %v630 = vpop.f32.mrb[0].mxu0
        %631 = vmatprep.mubr.f32.mxu0 0.0
        %632 = vmatmul.mubr.f32.gmra.mrb[0].mxu0 %v508
        %v633 = vpop.f32.mrb[0].mxu0
        %v634 = vadd.f32 %v486, %v633
        %v635 = vpop.f32.mrb[0].mxu0
        %636 = vmatprep.mubr.f32.mxu0 0.0
        %637 = vmatmul.mubr.f32.gmra.mrb[0].mxu0 %v511
        %v638 = vpop.f32.mrb[0].mxu0
        %v639 = vadd.f32 %v486, %v638
        %v640 = vpop.f32.mrb[0].mxu0
        %641 = vmatprep.mubr.f32.mxu0 0.0
        %642 = vmatmul.mubr.f32.gmra.mrb[0].mxu0 %v514
        %v643 = vpop.f32.mrb[0].mxu0
        %v644 = vadd.f32 %v486, %v643
        %v645 = vpop.f32.mrb[0].mxu0
        %646 = vmatprep.mubr.f32.mxu0 0.0
        %647 = vmatmul.mubr.f32.gmra.mrb[0].mxu0 %v517
        %v648 = vpop.f32.mrb[0].mxu0
        %v649 = vadd.f32 %v486, %v648
        %v650 = vpop.f32.mrb[0].mxu0
        %651 = vmatprep.mubr.f32.mxu0 0.0
        %652 = vmatmul.mubr.f32.gmra.mrb[0].mxu0 %v520
        %v653 = vpop.f32.mrb[0].mxu0
        %v654 = vadd.f32 %v486, %v653
        %v655 = vpop.f32.mrb[0].mxu0
        %656 = vmatprep.mubr.f32.mxu0 0.0
        %657 = vmatmul.mubr.f32.gmra.mrb[0].mxu0 %v523
        %v658 = vpop.f32.mrb[0].mxu0
        %v659 = vadd.f32 %v486, %v658
        %v660 = vpop.f32.mrb[0].mxu0
        %661 = vmatprep.mubr.f32.mxu0 0.0
        %662 = vmatmul.mubr.f32.gmra.mrb[0].mxu0 %v526
        %v663 = vpop.f32.mrb[0].mxu0
        %v664 = vadd.f32 %v486, %v663
        %v665 = vpop.f32.mrb[0].mxu0
        %666 = vmatprep.mubr.f32.mxu0 0.0
        %667 = vmatmul.mubr.f32.gmra.mrb[0].mxu0 %v529
        %v668 = vpop.f32.mrb[0].mxu0
        %v669 = vadd.f32 %v486, %v668
        %v670 = vpop.f32.mrb[0].mxu0
        %671 = vmatprep.mubr.f32.mxu0 0.0
        %672 = vmatmul.mubr.f32.gmra.mrb[0].mxu0 %v532
        %v673 = vpop.f32.mrb[0].mxu0
        %v674 = vadd.f32 %v486, %v673
        %v675 = vpop.f32.mrb[0].mxu0
        %676 = vmatprep.mubr.f32.mxu0 0.0
        %677 = vmatmul.mubr.f32.gmra.mrb[0].mxu0 %v535
        %v678 = vpop.f32.mrb[0].mxu0
        %v679 = vadd.f32 %v486, %v678
        %v680 = vpop.f32.mrb[0].mxu0
        %681 = vdwg.mxu0
        %682 = vst [vmem:[%s242] sm:$0xff] %v604
        %683 = vst [vmem:[%s242 + $0x8] sm:$0xff] %v609
        %684 = vst [vmem:[%s242 + $0x10] sm:$0xff] %v614
        %685 = vst [vmem:[%s242 + $0x18] sm:$0xff] %v619
        %686 = vst [vmem:[%s242 + $0x20] sm:$0xff] %v624
        %687 = vst [vmem:[%s242 + $0x28] sm:$0xff] %v629
        %688 = vst [vmem:[%s242 + $0x30] sm:$0xff] %v634
        %689 = vst [vmem:[%s242 + $0x38] sm:$0xff] %v639
        %690 = vst [vmem:[%s242 + $0x40] sm:$0xff] %v644
        %691 = vst [vmem:[%s242 + $0x48] sm:$0xff] %v649
        %692 = vst [vmem:[%s242 + $0x50] sm:$0xff] %v654
        %693 = vst [vmem:[%s242 + $0x58] sm:$0xff] %v659
        %694 = vst [vmem:[%s242 + $0x60] sm:$0xff] %v664
        %695 = vst [vmem:[%s242 + $0x68] sm:$0xff] %v669
        %696 = vst [vmem:[%s242 + $0x70] sm:$0xff] %v674
        %697 = vst [vmem:[%s242 + $0x78] sm:$0xff] %v679
        %s698 = sand.u32 %s140, 1
        %s699 = scalar_lea.sflag [#allocation4], %s698
        %s700 = sand.u32 %s140, 1
        %s701 = smul.addr %s700, 128
        %s702 = scalar_lea.vmem [#allocation5], %s701
        // Predicated region
        $region45: #{tpu_custom_call.1} parent=39 // pred_check
          %p703 = pneg %p150
        $region46: #{tpu_custom_call.1} parent=39 // pred_check_branch
          %705 = sbr.rel (%p703) target = $region48
        $region47: #{tpu_custom_call.1} parent=39 // pred_region
          %s706 = smul.u32 16, %s22
          %s708 = ssub.s32 2048, 2048
          %709 = vsyncadd %s699, %s708
          %s710 = smul.addr %s706, 128
          %s711 = scalar_lea.hbm %s5, %s710
          %s712 = sshll.u32 %s702, 4
          %s713 = int_to_ptr.vmem [resolvable:$true] %s712
          %718 = dma.vmem_to_hbm [thread:$0]  %s713, 2048, %s711, %s699, 128, 128, 8
        $region48: #{tpu_custom_call.1} parent=39 // pred_fallthru
          _
      $region40: #{tpu_custom_call.1} parent=5 // pred_fallthru
        _
      %p719 = scmp.le.s32.totalorder 2, %s17
      // Predicated region
      $region49: #{tpu_custom_call.1} parent=5 // pred_check
        %p720 = pneg %p719
      $region50: #{tpu_custom_call.1} parent=5 // pred_check_branch
        %722 = sbr.rel (%p720) target = $region52
      $region51: #{tpu_custom_call.1} parent=5 // pred_region
        %s723 = ssub.s32 %s17, 2
        // Predicated region
        $region53: #{tpu_custom_call.1} parent=51 // pred_check
          %p724 = pneg %p156
        $region54: #{tpu_custom_call.1} parent=51 // pred_check_branch
          %726 = sbr.rel (%p724) target = $region56
        $region55: #{tpu_custom_call.1} parent=51 // pred_region
          %s727 = sand.u32 %s141, 1
          %s728 = scalar_lea.sflag [#allocation4], %s727
          %s729 = sand.u32 %s141, 1
          %s730 = smul.addr %s729, 128
          %s731 = scalar_lea.vmem [#allocation5], %s730
          %732 = dma.done %s728, 2048
        $region56: #{tpu_custom_call.1} parent=51 // pred_fallthru
          _
      $region52: #{tpu_custom_call.1} parent=5 // pred_fallthru
        _
    $region6: #{tpu_custom_call.1} parent=1 // loop_footer
      %s21 = sadd.s32 1, %s17
    $region7: #{tpu_custom_call.1} parent=1 // loop_footer_branch
      %16 = sbr.rel target = $region3
    $region8: #{tpu_custom_call.1} parent=1 // loop_exit
      _
    %733 = vsyncpa [#allocation3], 1
    %s734 = scalar_lea.sflag [#allocation3], 1
    %735 = vsyncpa %s734, 1
    %736 = vsyncpa [#allocation4], 1
    %s737 = scalar_lea.sflag [#allocation4], 1
    %738 = vsyncpa %s737, 1

</llo_original>
